<compile_context>
chip_gen: v5e
topology: v5e:2x2
jax: 0.10.0
libtpu: 0.0.40
codegen_flags: <defaults>
</compile_context>

<pallas_src>
import functools

import jax
import jax.numpy as jnp
from jax.experimental import pallas as pl
from jax.experimental.pallas import tpu as pltpu


def _round_up(x, m):
    return (x + m - 1) // m * m


_VMEM_LIMIT = 48 * 1024 * 1024    # fits all of v5e / v6e / v7x physical VMEM
_VMEM_BUDGET = 40 * 1024 * 1024   # target for tile sizing (headroom for pipeline)
_NEG_INF = -1e30                  # finite mask for padded class columns


def _pick_tk(Kp):
    if Kp <= 512:
        return Kp
    for tk in (512, 384, 256, 128):
        if Kp % tk == 0:
            return tk
    return 128  # unreachable: Kp is a multiple of 128


def _padded_dims(K, N):
    """Padded contraction / class dims and K tile. 256-alignment for dims >128
    (v6e/v7x MXU is 2x256^2); 128 otherwise to keep tiny shapes cheap."""
    k_align = 256 if K > 128 else 128
    n_align = 256 if N > 128 else 128
    Kp = _round_up(K, k_align)
    Np = _round_up(N, n_align)
    return Kp, Np, _pick_tk(Kp)


def _vmem_bytes(tm, tk, Np):
    # double-buffered x / w / bias / out blocks + f32 accumulator scratch
    return (2 * tm * tk * 2 + 2 * tk * Np * 2 + 2 * Np * 4
            + 2 * tm * Np * 4 + tm * Np * 4)


def _pick_tm(M, tk, Np):
    cap = min(_round_up(M, 8), 256)
    if M > 16:
        # keep >= 2 row tiles so the "parallel" M axis can shard across the
        # two TensorCores of a v7x chip
        cap = min(cap, _round_up(pl.cdiv(M, 2), 16))
    for tm in (256, 128, 64, 32, 16, 8):
        if tm <= cap and _vmem_bytes(tm, tk, Np) <= _VMEM_BUDGET:
            return tm
    return 8


# --------------------------------------------------------------------------
# Fused Linear + softmax kernel (grid = (M tiles, K tiles))
# --------------------------------------------------------------------------

def _linear_softmax_kernel(x_ref, w_ref, b_ref, o_ref, acc_ref):
    k = pl.program_id(1)

    @pl.when(k == 0)
    def _():
        acc_ref[...] = jnp.zeros_like(acc_ref)

    acc_ref[...] += jnp.dot(x_ref[...], w_ref[...],
                            preferred_element_type=jnp.float32)

    @pl.when(k == pl.num_programs(1) - 1)
    def _():
        # Padded class columns carry bias = -1e30 (weights there are 0),
        # so exp() -> 0 and the padded softmax is exact without a mask.
        logits = acc_ref[...] + b_ref[...]
        m = jnp.max(logits, axis=-1, keepdims=True)
        e = jnp.exp(logits - m)
        s = jnp.sum(e, axis=-1, keepdims=True)
        o_ref[...] = (e / s).astype(o_ref.dtype)  # exact normalization


# --------------------------------------------------------------------------
# One-time parameter packing (hoisted out of the per-call path)
# --------------------------------------------------------------------------

def pack_classifier_params(weight, bias):
    """PyTorch layout [Out, In] -> padded [Kp, Np] bf16 + masked bias [1, Np]."""
    N, K = weight.shape
    Kp, Np, _ = _padded_dims(K, N)
    w_packed = jnp.zeros((Kp, Np), jnp.bfloat16)
    w_packed = w_packed.at[:K, :N].set(jnp.transpose(weight).astype(jnp.bfloat16))
    b_packed = jnp.full((1, Np), _NEG_INF, jnp.float32)
    b_packed = b_packed.at[0, :N].set(bias.astype(jnp.float32))
    return w_packed, b_packed


# --------------------------------------------------------------------------
# Forward
# --------------------------------------------------------------------------

@functools.partial(jax.jit, static_argnames=("out_features",))
def classifier_forward(x, w_packed, b_packed, *, out_features):
    """x: [M, In] f32 -> softmax(x @ W^T + b): [M, Out] f32."""
    M, K = x.shape
    N = out_features
    Kp, Np, tk = _padded_dims(K, N)
    assert w_packed.shape == (Kp, Np), (w_packed.shape, (Kp, Np))
    assert b_packed.shape == (1, Np), b_packed.shape

    tm = _pick_tm(M, tk, Np)
    Mp = _round_up(M, tm)

    if M == Mp and K == Kp:
        x_p = x.astype(jnp.bfloat16)  # already aligned: cast only, no pad copy
    else:
        x_p = jnp.zeros((Mp, Kp), jnp.bfloat16).at[:M, :K].set(
            x.astype(jnp.bfloat16))

    out = pl.pallas_call(
        _linear_softmax_kernel,
        out_shape=jax.ShapeDtypeStruct((Mp, Np), jnp.float32),
        grid_spec=pltpu.PrefetchScalarGridSpec(
            num_scalar_prefetch=0,
            grid=(Mp // tm, Kp // tk),
            in_specs=[
                pl.BlockSpec((tm, tk), lambda i, k: (i, k)),
                pl.BlockSpec((tk, Np), lambda i, k: (k, 0)),
                pl.BlockSpec((1, Np), lambda i, k: (0, 0)),
            ],
            out_specs=pl.BlockSpec((tm, Np), lambda i, k: (i, 0)),
            scratch_shapes=[pltpu.VMEM((tm, Np), jnp.float32)],
        ),
        compiler_params=pltpu.CompilerParams(
            dimension_semantics=("parallel", "arbitrary"),
            vmem_limit_bytes=_VMEM_LIMIT,
        ),
        cost_estimate=pl.CostEstimate(
            flops=2 * Mp * Kp * Np,
            transcendentals=Mp * Np,
            bytes_accessed=Mp * Kp * 2 + Kp * Np * 2 + Np * 4 + Mp * Np * 4,
        ),
    )(x_p, w_packed, b_packed)
    return out[:M, :N]


# --------------------------------------------------------------------------
# Deterministic parameter init (mirrors nn.Linear default init) + reference
# --------------------------------------------------------------------------

def init_linear(key, in_features, out_features):
    kw, kb = jax.random.split(key)
    bound = 1.0 / jnp.sqrt(jnp.float32(in_features))
    weight = jax.random.uniform(kw, (out_features, in_features), jnp.float32,
                                minval=-bound, maxval=bound)
    bias = jax.random.uniform(kb, (out_features,), jnp.float32,
                              minval=-bound, maxval=bound)
    return weight, bias


def _reference(x, weight, bias):
    # Same bf16 input rounding as the kernel, f32 accumulation, exact softmax.
    xb = x.astype(jnp.bfloat16).astype(jnp.float32)
    wb = weight.astype(jnp.bfloat16).astype(jnp.float32)
    return jax.nn.softmax(xb @ wb.T + bias, axis=-1)


if __name__ == "__main__":
    key = jax.random.PRNGKey(0)
    k_x1, k_p1, k_x2, k_p2 = jax.random.split(key, 4)

    # Case 1: shapes implied by the module spec (small batch / hidden).
    batch, in_features, out_features = 2, 32, 8
    x = jax.random.normal(k_x1, (batch, in_features), jnp.float32)
    weight, bias = init_linear(k_p1, in_features, out_features)
    w_packed, b_packed = pack_classifier_params(weight, bias)
    probs = classifier_forward(x, w_packed, b_packed, out_features=out_features)
    jax.block_until_ready(probs)
    ref = _reference(x, weight, bias)
    assert probs.shape == (batch, out_features), probs.shape
    assert bool(jnp.all(jnp.abs(jnp.sum(probs, axis=-1) - 1.0) < 1e-4))
    assert bool(jnp.max(jnp.abs(probs - ref)) < 2e-3)

    # Case 2: exercises K tiling (multiple K grid steps), row tiling and
    # padded class-column masking via the bias.
    batch2, in2, out2 = 48, 600, 130
    x2 = jax.random.normal(k_x2, (batch2, in2), jnp.float32)
    w2, b2 = init_linear(k_p2, in2, out2)
    w2_packed, b2_packed = pack_classifier_params(w2, b2)
    probs2 = classifier_forward(x2, w2_packed, b2_packed, out_features=out2)
    jax.block_until_ready(probs2)
    ref2 = _reference(x2, w2, b2)
    assert probs2.shape == (batch2, out2), probs2.shape
    assert bool(jnp.all(jnp.abs(jnp.sum(probs2, axis=-1) - 1.0) < 1e-4))
    assert bool(jnp.max(jnp.abs(probs2 - ref2)) < 2e-3)

    print("KERNEL_OK")
</pallas_src>

<mosaic_0001>
module attributes {stable_mosaic.version = 11 : i64} {
  func.func @_linear_softmax_kernel(%arg0: i32, %arg1: i32, %arg2: memref<8x128xbf16, #tpu.memory_space<vmem>>, %arg3: memref<128x128xbf16, #tpu.memory_space<vmem>>, %arg4: memref<1x128xf32, #tpu.memory_space<vmem>>, %arg5: memref<8x128xf32, #tpu.memory_space<vmem>>, %arg6: memref<8x128xf32, #tpu.memory_space<vmem>>) attributes {dimension_semantics = [#tpu.dimension_semantics<parallel>, #tpu.dimension_semantics<arbitrary>], iteration_bounds = array<i64: 1, 1>, scalar_prefetch = 0 : i64, scratch_operands = 1 : i64, tpu.core_type = #tpu.core_type<tc>, window_params = [{transform_indices = @transform_0, window_bounds = array<i64: 8, 128>}, {transform_indices = @transform_1, window_bounds = array<i64: 128, 128>}, {pipeline_mode = #tpu.pipeline_mode<synchronous>, transform_indices = @transform_2, window_bounds = array<i64: 1, 128>}, {transform_indices = @transform_3, window_bounds = array<i64: 8, 128>}]} {
    %c0_i32 = arith.constant 0 : i32
    %0 = arith.cmpi eq, %arg1, %c0_i32 : i32
    %1 = arith.extui %0 : i1 to i32
    %c0_i32_0 = arith.constant 0 : i32
    %2 = arith.cmpi ne, %1, %c0_i32_0 : i32
    scf.if %2 {
      %cst_10 = arith.constant 0.000000e+00 : f32
      %12 = vector.broadcast %cst_10 : f32 to vector<8x128xf32>
      %c0_11 = arith.constant 0 : index
      %c0_12 = arith.constant 0 : index
      %13 = vector.load %arg6[%c0_11, %c0_12] : memref<8x128xf32, #tpu.memory_space<vmem>>, vector<8x128xf32>
      tpu.vector_store %arg6[%c0_11, %c0_12], %12 {strides = array<i32>} : memref<8x128xf32, #tpu.memory_space<vmem>>, vector<8x128xf32>,
    } else {
    }
    %c0 = arith.constant 0 : index
    %c0_1 = arith.constant 0 : index
    %3 = vector.load %arg6[%c0, %c0_1] : memref<8x128xf32, #tpu.memory_space<vmem>>, vector<8x128xf32>
    %c0_2 = arith.constant 0 : index
    %c0_3 = arith.constant 0 : index
    %4 = vector.load %arg2[%c0_2, %c0_3] : memref<8x128xbf16, #tpu.memory_space<vmem>>, vector<8x128xbf16>
    %c0_4 = arith.constant 0 : index
    %c0_5 = arith.constant 0 : index
    %5 = vector.load %arg3[%c0_4, %c0_5] : memref<128x128xbf16, #tpu.memory_space<vmem>>, vector<128x128xbf16>
    %cst = arith.constant dense<0.000000e+00> : vector<8x128xf32>
    %6 = tpu.matmul %4, %5, %cst {dimension_numbers = #tpu.dot_dimension_numbers<[1], [0], [0], [1], [0, 0, 1, 1], [], []>} : vector<8x128xbf16>, vector<128x128xbf16>, vector<8x128xf32> -> vector<8x128xf32>
    %7 = arith.addf %3, %6 : vector<8x128xf32>
    %c0_6 = arith.constant 0 : index
    %c0_7 = arith.constant 0 : index
    %8 = vector.load %arg6[%c0_6, %c0_7] : memref<8x128xf32, #tpu.memory_space<vmem>>, vector<8x128xf32>
    tpu.vector_store %arg6[%c0_6, %c0_7], %7 {strides = array<i32>} : memref<8x128xf32, #tpu.memory_space<vmem>>, vector<8x128xf32>,
    %c0_i32_8 = arith.constant 0 : i32
    %9 = arith.cmpi eq, %arg1, %c0_i32_8 : i32
    %10 = arith.extui %9 : i1 to i32
    %c0_i32_9 = arith.constant 0 : i32
    %11 = arith.cmpi ne, %10, %c0_i32_9 : i32
    scf.if %11 {
      %c0_10 = arith.constant 0 : index
      %c0_11 = arith.constant 0 : index
      %12 = vector.load %arg6[%c0_10, %c0_11] : memref<8x128xf32, #tpu.memory_space<vmem>>, vector<8x128xf32>
      %c0_12 = arith.constant 0 : index
      %c0_13 = arith.constant 0 : index
      %13 = vector.load %arg4[%c0_12, %c0_13] : memref<1x128xf32, #tpu.memory_space<vmem>>, vector<1x128xf32>
      %14 = vector.broadcast %13 : vector<1x128xf32> to vector<8x128xf32>
      %15 = arith.addf %12, %14 : vector<8x128xf32>
      %cst_14 = arith.constant dense<0xFF800000> : vector<8xf32>
      %16 = vector.multi_reduction <maximumf>, %15, %cst_14 [1] : vector<8x128xf32> to vector<8xf32>
      %17 = vector.shape_cast %16 : vector<8xf32> to vector<8x1xf32>
      %18 = vector.broadcast %17 : vector<8x1xf32> to vector<8x128xf32>
      %19 = arith.subf %15, %18 : vector<8x128xf32>
      %20 = math.exp %19 : vector<8x128xf32>
      %cst_15 = arith.constant dense<0.000000e+00> : vector<8xf32>
      %21 = vector.multi_reduction <add>, %20, %cst_15 [1] : vector<8x128xf32> to vector<8xf32>
      %22 = vector.shape_cast %21 : vector<8xf32> to vector<8x1xf32>
      %23 = vector.broadcast %22 : vector<8x1xf32> to vector<8x128xf32>
      %24 = arith.divf %20, %23 : vector<8x128xf32>
      %c0_16 = arith.constant 0 : index
      %c0_17 = arith.constant 0 : index
      %25 = vector.load %arg5[%c0_16, %c0_17] : memref<8x128xf32, #tpu.memory_space<vmem>>, vector<8x128xf32>
      tpu.vector_store %arg5[%c0_16, %c0_17], %24 {strides = array<i32>} : memref<8x128xf32, #tpu.memory_space<vmem>>, vector<8x128xf32>,
    } else {
    }
    return
  }
  func.func @transform_0(%arg0: i32, %arg1: i32) -> (i32, i32) {
    %c0_i32 = arith.constant 0 : i32
    return %arg0, %arg1 : i32, i32
  }
  func.func @transform_1(%arg0: i32, %arg1: i32) -> (i32, i32) {
    %c0_i32 = arith.constant 0 : i32
    %c0_i32_0 = arith.constant 0 : i32
    return %arg1, %c0_i32 : i32, i32
  }
  func.func @transform_2(%arg0: i32, %arg1: i32) -> (i32, i32) {
    %c0_i32 = arith.constant 0 : i32
    %c0_i32_0 = arith.constant 0 : i32
    %c0_i32_1 = arith.constant 0 : i32
    return %c0_i32, %c0_i32_0 : i32, i32
  }
  func.func @transform_3(%arg0: i32, %arg1: i32) -> (i32, i32) {
    %c0_i32 = arith.constant 0 : i32
    %c0_i32_0 = arith.constant 0 : i32
    return %arg0, %c0_i32 : i32, i32
  }
}

</mosaic_0001>

<llo_original>
// kernel: classifier_forward.1
$region0: #{classifier_forward.1}
  #allocation0 [shape = 'u32[]', space=smem, size = 0x4, offset = 0x4, fixed_abs, tag = 'smem constant byte address 0x4 - core index']
  #allocation1 [shape = 'u32[72,128]{1,0:T(1,128)}', space=vmem, size = 0x9000, scoped, tag = 'internal scratch']
  #allocation2 [shape = 'f32[8,128]{1,0:T(8,128)}', space=vmem, size = 0x1000, scoped, tag = 'scratch operand']
  %s0 = inlined_call_operand.vmem [shape: bf16[8,128], index: 0, kind: input, shape index: {}]
  %s1 = inlined_call_operand.hbm [shape: bf16[128,128], index: 1, kind: input, shape index: {}]
  %s2 = inlined_call_operand.vmem [shape: f32[1,128], index: 2, kind: input, shape index: {}]
  %s3 = inlined_call_operand.vmem [shape: f32[8,128], index: 3, kind: output, shape index: {}]
  %s4 = sld [smem:[#allocation0]]
  $region34: #{classifier_forward.1} parent=0
    _
  %s6 = ssub.s32 1, %s4
  %s7 = scalar_select 0, %s6, %s4
  $region1: #{classifier_forward.1} parent=0
    #allocation3 [shape = 'u8[32768]{0}', space=vmem, size = 0x8000, scoped, tag = 'input window, operand 1, single buffered']
    #allocation4 [shape = 's32[1]{0}', space=sflag, size = 0x4, scoped, tag = 'scoped memory for classifier_forward.1']
    %8 = vsyncpa [#allocation4], 0
    // Predicated region
    $region2: #{classifier_forward.1} parent=1 // pred_check
      _
    $region3: #{classifier_forward.1} parent=1 // pred_check_branch
      %10 = sbr.rel (0) target = $region5
    $region4: #{classifier_forward.1} parent=1 // pred_region
      _
    $region5: #{classifier_forward.1} parent=1 // pred_fallthru
      _
    // Predicated region
    $region6: #{classifier_forward.1} parent=1 // pred_check
      _
    $region7: #{classifier_forward.1} parent=1 // pred_check_branch
      %12 = sbr.rel (0) target = $region9
    $region8: #{classifier_forward.1} parent=1 // pred_region
      %14 = vsyncadd [#allocation4], 0
      %s15 = sshll.u32 %s1, 4
      %s16 = int_to_ptr.hbm [resolvable:$true] %s15
      %s17 = sshll.u32 [#allocation3], 4
      %s18 = int_to_ptr.vmem [resolvable:$true] %s17
      %23 = dma.hbm_to_vmem [thread:$0]  %s16, 1024, %s18, [#allocation4], 64, 64, 4
    $region9: #{classifier_forward.1} parent=1 // pred_fallthru
      _
    // Predicated region
    $region10: #{classifier_forward.1} parent=1 // pred_check
      _
    $region11: #{classifier_forward.1} parent=1 // pred_check_branch
      %25 = sbr.rel (0) target = $region13
    $region12: #{classifier_forward.1} parent=1 // pred_region
      _
    $region13: #{classifier_forward.1} parent=1 // pred_fallthru
      _
    // Predicated region
    $region14: #{classifier_forward.1} parent=1 // pred_check
      _
    $region15: #{classifier_forward.1} parent=1 // pred_check_branch
      %27 = sbr.rel (0) target = $region17
    $region16: #{classifier_forward.1} parent=1 // pred_region
      %29 = dma.done [#allocation4], 1024
    $region17: #{classifier_forward.1} parent=1 // pred_fallthru
      _
    %p30 = scmp.eq.s32.totalorder 0, 0
    // Predicated region
    $region18: #{classifier_forward.1} parent=1 // pred_check
      %p31 = pneg %p30
    $region19: #{classifier_forward.1} parent=1 // pred_check_branch
      %33 = sbr.rel (%p31) target = $region21
    $region20: #{classifier_forward.1} parent=1 // pred_region
      %34 = vst [vmem:[#allocation2] sm:$0xff] 0.0
    $region21: #{classifier_forward.1} parent=1 // pred_fallthru
      _
    %v35 = vld [vmem:[#allocation2] sm:$0xff]
    %v36 = vld [vmem:[%s0] sm:$0xf]
    %v37 = vld [vmem:[#allocation3] sm:$0xf]
    %v38 = vld [vmem:[#allocation3 + $0x4] sm:$0xf]
    %v39 = vld [vmem:[#allocation3 + $0x8] sm:$0xf]
    %v40 = vld [vmem:[#allocation3 + $0xc] sm:$0xf]
    %v41 = vld [vmem:[#allocation3 + $0x10] sm:$0xf]
    %v42 = vld [vmem:[#allocation3 + $0x14] sm:$0xf]
    %v43 = vld [vmem:[#allocation3 + $0x18] sm:$0xf]
    %v44 = vld [vmem:[#allocation3 + $0x1c] sm:$0xf]
    %v45 = vld [vmem:[#allocation3 + $0x20] sm:$0xf]
    %v46 = vld [vmem:[#allocation3 + $0x24] sm:$0xf]
    %v47 = vld [vmem:[#allocation3 + $0x28] sm:$0xf]
    %v48 = vld [vmem:[#allocation3 + $0x2c] sm:$0xf]
    %v49 = vld [vmem:[#allocation3 + $0x30] sm:$0xf]
    %v50 = vld [vmem:[#allocation3 + $0x34] sm:$0xf]
    %v51 = vld [vmem:[#allocation3 + $0x38] sm:$0xf]
    %v52 = vld [vmem:[#allocation3 + $0x3c] sm:$0xf]
    %v69 = vunpack.c.l.b16 %v37
    %v70 = vunpack.c.l.b16 %v38
    %v71 = vunpack.c.l.b16 %v39
    %v72 = vunpack.c.l.b16 %v40
    %v73 = vunpack.c.l.b16 %v41
    %v74 = vunpack.c.l.b16 %v42
    %v75 = vunpack.c.l.b16 %v43
    %v76 = vunpack.c.l.b16 %v44
    %v77 = vunpack.c.l.b16 %v45
    %v78 = vunpack.c.l.b16 %v46
    %v79 = vunpack.c.l.b16 %v47
    %v80 = vunpack.c.l.b16 %v48
    %v81 = vunpack.c.l.b16 %v49
    %v82 = vunpack.c.l.b16 %v50
    %v83 = vunpack.c.l.b16 %v51
    %v84 = vunpack.c.l.b16 %v52
    %v85 = vpack.c.b16 %v70, %v69
    %v86 = vpack.c.b16 %v72, %v71
    %v87 = vpack.c.b16 %v74, %v73
    %v88 = vpack.c.b16 %v76, %v75
    %v89 = vpack.c.b16 %v78, %v77
    %v90 = vpack.c.b16 %v80, %v79
    %v91 = vpack.c.b16 %v82, %v81
    %v92 = vpack.c.b16 %v84, %v83
    %101 = vmatpush.bf16.msra.mxu0 %v92
    %102 = vmatpush.bf16.msra.mxu0 %v91
    %103 = vmatpush.bf16.msra.mxu0 %v90
    %104 = vmatpush.bf16.msra.mxu0 %v89
    %105 = vmatpush.bf16.msra.mxu0 %v88
    %106 = vmatpush.bf16.msra.mxu0 %v87
    %107 = vmatpush.bf16.msra.mxu0 %v86
    %108 = vmatpush.bf16.msra.mxu0 %v85
    %109 = vmatmul.bf16.gmra.mxu0 %v36
    %v110 = vpop.f32.mrf.mxu0
    %v111 = vadd.f32 0.0, %v110
    %v112 = vpop.f32.mrf.mxu0
    %113 = vdwg.mxu0
    %v114 = vadd.f32 %v35, %v111
    %115 = vst [vmem:[#allocation2] sm:$0xff] %v114
    // Predicated region
    $region22: #{classifier_forward.1} parent=1 // pred_check
      %p116 = pneg %p30
    $region23: #{classifier_forward.1} parent=1 // pred_check_branch
      %118 = sbr.rel (%p116) target = $region25
    $region24: #{classifier_forward.1} parent=1 // pred_region
      %v119 = vld [vmem:[#allocation2] sm:$0xff]
      %v120 = vld [vmem:[%s2] sm:$0x1]
      %v122 = vperm.slane %v120, 0
      %v124 = vadd.f32 %v119, %v122
      %125 = vmax.xlane.f32.xlu0 %v124
      %v126 = vpop.xlane.xlu0 %125
      %v127 = vsub.f32 %v124, %v126
      %v128 = vmul.f32 %v127, 1.442695
      %v129 = vpow.pop %v128
      %130 = vadd.xlane.f32.xlu0 %v129
      %v131 = vpop.xlane.xlu0 %130
      %v132 = vrcp.pop %v131
      %v133 = vmul.f32 %v131, %v132
      %v134 = vsub.f32 1.0, %v133
      %v135 = vmul.f32 %v132, %v134
      %v136 = vadd.f32 %v132, %v135
      %vm137 = vweird.f32 %v131
      %vm138 = vweird.f32 %v132
      %vm139 = vmor %vm137, %vm138
      %v140 = vsel %vm139, %v132, %v136
      %v141 = vand.u32 2147483647, %v131
      %vm142 = vcmp.eq.f32.partialorder %v141, 8.507059e+37
      %v143 = vand.u32 %v131, 2147483648
      %v144 = vor.u32 1.1754944e-38, %v143
      %v145 = vsel %vm142, %v144, %v140
      %v146 = vmul.f32 %v129, %v145
      %147 = vst [vmem:[%s3] sm:$0xff] %v146
    $region25: #{classifier_forward.1} parent=1 // pred_fallthru
      _
    // Predicated region
    $region26: #{classifier_forward.1} parent=1 // pred_check
      _
    $region27: #{classifier_forward.1} parent=1 // pred_check_branch
      %149 = sbr.rel (0) target = $region29
    $region28: #{classifier_forward.1} parent=1 // pred_region
      _
    $region29: #{classifier_forward.1} parent=1 // pred_fallthru
      _
    // Predicated region
    $region30: #{classifier_forward.1} parent=1 // pred_check
      _
    $region31: #{classifier_forward.1} parent=1 // pred_check_branch
      %151 = sbr.rel (0) target = $region33
    $region32: #{classifier_forward.1} parent=1 // pred_region
      _
    $region33: #{classifier_forward.1} parent=1 // pred_fallthru
      _
    %152 = vsyncpa [#allocation4], 1

</llo_original>
